<compile_context>
chip_gen: v7x
topology: tpu7x:2x2x1
jax: 0.10.0
libtpu: 0.0.40
codegen_flags: <defaults>
</compile_context>

<pallas_src>
import functools

import jax
import jax.numpy as jnp
from jax.experimental import pallas as pl
from jax.experimental.pallas import tpu as pltpu

_NEG_SLOPE = 0.01  # F.leaky_relu default


def _leaky_relu(x):
    return jnp.where(x > 0, x, _NEG_SLOPE * x)


def _round_up(a, b):
    return (a + b - 1) // b * b


def _sensor_kernel(x_ref, w2_ref, b2_ref,
                   w3_ref, b3_ref, dw3_ref, db3_ref, sin3_ref, sout3_ref,
                   w6_ref, b6_ref, dw6_ref, db6_ref, sin6_ref, sout6_ref,
                   o_ref):
    x = x_ref[...].astype(jnp.float32)                                   # (TB, in)

    # fc2: plain Linear + leaky_relu
    h = jnp.dot(x, w2_ref[...], preferred_element_type=jnp.float32) + b2_ref[...]
    h = _leaky_relu(h)                                                   # (TB, 128)

    # fc3: LinearFlipout + leaky_relu
    mu = jnp.dot(h, w3_ref[...], preferred_element_type=jnp.float32) + b3_ref[...]
    pert = (jnp.dot(h * sin3_ref[...], dw3_ref[...],
                    preferred_element_type=jnp.float32) + db3_ref[...]) * sout3_ref[...]
    h = _leaky_relu(mu + pert)                                           # (TB, 256)

    # fc6: LinearFlipout (no activation)
    mu = jnp.dot(h, w6_ref[...], preferred_element_type=jnp.float32) + b6_ref[...]
    pert = (jnp.dot(h * sin6_ref[...], dw6_ref[...],
                    preferred_element_type=jnp.float32) + db6_ref[...]) * sout6_ref[...]
    o_ref[...] = (mu + pert).astype(o_ref.dtype)                         # (TB, dim_z)


def _mini_sensor_pallas(x_rep, w2, b2,
                        w3, b3, dw3, db3, sin3, sout3,
                        w6, b6, dw6, db6, sin6, sout6, *, row_tile=128):
    """Fused forward over flat batch x_rep: (B, input_size) -> (B, dim_z)."""
    B, in_dim = x_rep.shape
    h1 = w2.shape[1]
    h2 = w3.shape[1]
    dz = w6.shape[1]

    tb = min(row_tile, _round_up(B, 8))      # row tile, multiple of 8 sublanes
    b_pad = _round_up(B, tb)
    if b_pad != B:
        pad = lambda a: jnp.pad(a, ((0, b_pad - a.shape[0]), (0, 0)))
        x_rep, sin3, sout3, sin6, sout6 = (pad(a) for a in
                                           (x_rep, sin3, sout3, sin6, sout6))

    row = lambda c: pl.BlockSpec((tb, c), lambda i: (i, 0))   # per-row-tile inputs
    res = lambda r, c: pl.BlockSpec((r, c), lambda i: (0, 0)) # VMEM-resident params

    out = pl.pallas_call(
        _sensor_kernel,
        out_shape=jax.ShapeDtypeStruct((b_pad, dz), jnp.float32),
        grid_spec=pltpu.PrefetchScalarGridSpec(
            num_scalar_prefetch=0,
            grid=(b_pad // tb,),
            in_specs=[row(in_dim),
                      res(in_dim, h1), res(1, h1),
                      res(h1, h2), res(1, h2), res(h1, h2), res(1, h2),
                      row(h1), row(h2),
                      res(h2, dz), res(1, dz), res(h2, dz), res(1, dz),
                      row(h2), row(dz)],
            out_specs=pl.BlockSpec((tb, dz), lambda i: (i, 0)),
        ),
        compiler_params=pltpu.CompilerParams(
            dimension_semantics=("parallel",)),
    )(x_rep, w2, b2, w3, b3, dw3, db3, sin3, sout3,
      w6, b6, dw6, db6, sin6, sout6)
    return out[:B]


class MiniSensorModel:
    """JAX/Pallas port of the PyTorch miniSensorModel."""

    def __init__(self, num_ensemble, input_size, dim_z, *, key):
        self.num_ensemble = num_ensemble
        self.input_size = input_size
        self.dim_z = dim_z

        ks = jax.random.split(key, 6)
        # fc2: nn.Linear(input_size, 128), PyTorch default U(-1/sqrt(fan_in), ...)
        lim = 1.0 / float(input_size) ** 0.5
        self.w2 = jax.random.uniform(ks[0], (input_size, 128), jnp.float32, -lim, lim)
        self.b2 = jax.random.uniform(ks[1], (1, 128), jnp.float32, -lim, lim)
        # fc3 / fc6: LinearFlipout posterior mu ~ N(0, 0.1), rho = -3.0
        self.w3_mu = 0.1 * jax.random.normal(ks[2], (128, 256), jnp.float32)
        self.b3_mu = 0.1 * jax.random.normal(ks[3], (1, 256), jnp.float32)
        self.w3_rho = jnp.full((128, 256), -3.0, jnp.float32)
        self.b3_rho = jnp.full((1, 256), -3.0, jnp.float32)
        self.w6_mu = 0.1 * jax.random.normal(ks[4], (256, dim_z), jnp.float32)
        self.b6_mu = 0.1 * jax.random.normal(ks[5], (1, dim_z), jnp.float32)
        self.w6_rho = jnp.full((256, dim_z), -3.0, jnp.float32)
        self.b6_rho = jnp.full((1, dim_z), -3.0, jnp.float32)

    # --- helpers -----------------------------------------------------------
    def _expand(self, x):
        """[bs, 1, in] -> (bs*num_ensemble, in) (repeat per ensemble member)."""
        bs = x.shape[0]
        x2 = jnp.broadcast_to(x.reshape(bs, 1, self.input_size),
                              (bs, self.num_ensemble, self.input_size))
        return x2.reshape(bs * self.num_ensemble, self.input_size).astype(jnp.float32)

    def _sample(self, B, key):
        """Flipout randomness: weight/bias eps and +/-1 sign matrices."""
        softplus = lambda r: jnp.log1p(jnp.exp(r))
        sign = lambda k, s: jnp.sign(
            jax.random.uniform(k, s, jnp.float32, -1.0, 1.0))
        ks = jax.random.split(key, 8)
        return dict(
            dw3=softplus(self.w3_rho) * jax.random.normal(ks[0], self.w3_rho.shape),
            db3=softplus(self.b3_rho) * jax.random.normal(ks[1], self.b3_rho.shape),
            dw6=softplus(self.w6_rho) * jax.random.normal(ks[2], self.w6_rho.shape),
            db6=softplus(self.b6_rho) * jax.random.normal(ks[3], self.b6_rho.shape),
            sin3=sign(ks[4], (B, 128)),
            sout3=sign(ks[5], (B, 256)),
            sin6=sign(ks[6], (B, 256)),
            sout6=sign(ks[7], (B, self.dim_z)),
        )

    # --- Pallas forward ----------------------------------------------------
    def __call__(self, x, *, key):
        bs = x.shape[0]
        x_rep = self._expand(x)
        r = self._sample(x_rep.shape[0], key)
        obs = _mini_sensor_pallas(
            x_rep, self.w2, self.b2,
            self.w3_mu, self.b3_mu, r["dw3"], r["db3"], r["sin3"], r["sout3"],
            self.w6_mu, self.b6_mu, r["dw6"], r["db6"], r["sin6"], r["sout6"])
        return obs.reshape(bs, self.num_ensemble, self.dim_z)

    # --- pure-JAX reference (same key -> same randomness) ------------------
    def reference(self, x, *, key):
        bs = x.shape[0]
        h = self._expand(x)
        r = self._sample(h.shape[0], key)
        h = _leaky_relu(h @ self.w2 + self.b2)
        mu = h @ self.w3_mu + self.b3_mu
        pert = ((h * r["sin3"]) @ r["dw3"] + r["db3"]) * r["sout3"]
        h = _leaky_relu(mu + pert)
        mu = h @ self.w6_mu + self.b6_mu
        pert = ((h * r["sin6"]) @ r["dw6"] + r["db6"]) * r["sout6"]
        obs = mu + pert
        return obs.reshape(bs, self.num_ensemble, self.dim_z)


if __name__ == "__main__":
    key = jax.random.PRNGKey(0)
    k_init, k_data, k_fwd = jax.random.split(key, 3)

    batch_size, num_ensemble, input_size, dim_z = 2, 32, 8, 32
    model = MiniSensorModel(num_ensemble, input_size, dim_z, key=k_init)

    x = jax.random.normal(k_data, (batch_size, 1, input_size), dtype=jnp.float32)

    out = jax.block_until_ready(model(x, key=k_fwd))
    assert out.shape == (batch_size, num_ensemble, dim_z), out.shape

    ref = jax.block_until_ready(model.reference(x, key=k_fwd))
    assert jnp.allclose(out, ref, atol=1e-3, rtol=1e-3), (
        float(jnp.max(jnp.abs(out - ref))))

    print("KERNEL_OK")
</pallas_src>

<mosaic_0001>
module attributes {stable_mosaic.version = 11 : i64} {
  func.func @_sensor_kernel(%arg0: i32, %arg1: memref<64x8xf32, #tpu.memory_space<vmem>>, %arg2: memref<8x128xf32, #tpu.memory_space<vmem>>, %arg3: memref<1x128xf32, #tpu.memory_space<vmem>>, %arg4: memref<128x256xf32, #tpu.memory_space<vmem>>, %arg5: memref<1x256xf32, #tpu.memory_space<vmem>>, %arg6: memref<128x256xf32, #tpu.memory_space<vmem>>, %arg7: memref<1x256xf32, #tpu.memory_space<vmem>>, %arg8: memref<64x128xf32, #tpu.memory_space<vmem>>, %arg9: memref<64x256xf32, #tpu.memory_space<vmem>>, %arg10: memref<256x32xf32, #tpu.memory_space<vmem>>, %arg11: memref<1x32xf32, #tpu.memory_space<vmem>>, %arg12: memref<256x32xf32, #tpu.memory_space<vmem>>, %arg13: memref<1x32xf32, #tpu.memory_space<vmem>>, %arg14: memref<64x256xf32, #tpu.memory_space<vmem>>, %arg15: memref<64x32xf32, #tpu.memory_space<vmem>>, %arg16: memref<64x32xf32, #tpu.memory_space<vmem>>) attributes {dimension_semantics = [#tpu.dimension_semantics<parallel>], iteration_bounds = array<i64: 1>, scalar_prefetch = 0 : i64, scratch_operands = 0 : i64, tpu.core_type = #tpu.core_type<tc>, window_params = [{transform_indices = @transform_0, window_bounds = array<i64: 64, 8>}, {pipeline_mode = #tpu.pipeline_mode<synchronous>, transform_indices = @transform_1, window_bounds = array<i64: 8, 128>}, {pipeline_mode = #tpu.pipeline_mode<synchronous>, transform_indices = @transform_2, window_bounds = array<i64: 1, 128>}, {pipeline_mode = #tpu.pipeline_mode<synchronous>, transform_indices = @transform_3, window_bounds = array<i64: 128, 256>}, {pipeline_mode = #tpu.pipeline_mode<synchronous>, transform_indices = @transform_4, window_bounds = array<i64: 1, 256>}, {pipeline_mode = #tpu.pipeline_mode<synchronous>, transform_indices = @transform_5, window_bounds = array<i64: 128, 256>}, {pipeline_mode = #tpu.pipeline_mode<synchronous>, transform_indices = @transform_6, window_bounds = array<i64: 1, 256>}, {transform_indices = @transform_7, window_bounds = array<i64: 64, 128>}, {transform_indices = @transform_8, window_bounds = array<i64: 64, 256>}, {pipeline_mode = #tpu.pipeline_mode<synchronous>, transform_indices = @transform_9, window_bounds = array<i64: 256, 32>}, {pipeline_mode = #tpu.pipeline_mode<synchronous>, transform_indices = @transform_10, window_bounds = array<i64: 1, 32>}, {pipeline_mode = #tpu.pipeline_mode<synchronous>, transform_indices = @transform_11, window_bounds = array<i64: 256, 32>}, {pipeline_mode = #tpu.pipeline_mode<synchronous>, transform_indices = @transform_12, window_bounds = array<i64: 1, 32>}, {transform_indices = @transform_13, window_bounds = array<i64: 64, 256>}, {transform_indices = @transform_14, window_bounds = array<i64: 64, 32>}, {transform_indices = @transform_15, window_bounds = array<i64: 64, 32>}]} {
    %c0 = arith.constant 0 : index
    %c0_0 = arith.constant 0 : index
    %0 = vector.load %arg1[%c0, %c0_0] : memref<64x8xf32, #tpu.memory_space<vmem>>, vector<64x8xf32>
    %c0_1 = arith.constant 0 : index
    %c0_2 = arith.constant 0 : index
    %1 = vector.load %arg2[%c0_1, %c0_2] : memref<8x128xf32, #tpu.memory_space<vmem>>, vector<8x128xf32>
    %cst = arith.constant dense<0.000000e+00> : vector<64x128xf32>
    %2 = tpu.matmul %0, %1, %cst {dimension_numbers = #tpu.dot_dimension_numbers<[1], [0], [0], [1], [0, 0, 1, 1], [], []>} : vector<64x8xf32>, vector<8x128xf32>, vector<64x128xf32> -> vector<64x128xf32>
    %c0_3 = arith.constant 0 : index
    %c0_4 = arith.constant 0 : index
    %3 = vector.load %arg3[%c0_3, %c0_4] : memref<1x128xf32, #tpu.memory_space<vmem>>, vector<1x128xf32>
    %4 = vector.broadcast %3 : vector<1x128xf32> to vector<64x128xf32>
    %5 = arith.addf %2, %4 : vector<64x128xf32>
    %cst_5 = arith.constant 0.000000e+00 : f32
    %6 = vector.broadcast %cst_5 : f32 to vector<64x128xf32>
    %7 = arith.cmpf ogt, %5, %6 : vector<64x128xf32>
    %cst_6 = arith.constant 0.00999999977 : f32
    %8 = vector.broadcast %cst_6 : f32 to vector<64x128xf32>
    %9 = arith.mulf %8, %5 : vector<64x128xf32>
    %10 = arith.select %7, %5, %9 : vector<64x128xi1>, vector<64x128xf32>
    %c0_7 = arith.constant 0 : index
    %c0_8 = arith.constant 0 : index
    %11 = vector.load %arg4[%c0_7, %c0_8] : memref<128x256xf32, #tpu.memory_space<vmem>>, vector<128x256xf32>
    %cst_9 = arith.constant dense<0.000000e+00> : vector<64x256xf32>
    %12 = tpu.matmul %10, %11, %cst_9 {dimension_numbers = #tpu.dot_dimension_numbers<[1], [0], [0], [1], [0, 0, 1, 1], [], []>} : vector<64x128xf32>, vector<128x256xf32>, vector<64x256xf32> -> vector<64x256xf32>
    %c0_10 = arith.constant 0 : index
    %c0_11 = arith.constant 0 : index
    %13 = vector.load %arg5[%c0_10, %c0_11] : memref<1x256xf32, #tpu.memory_space<vmem>>, vector<1x256xf32>
    %14 = vector.broadcast %13 : vector<1x256xf32> to vector<64x256xf32>
    %15 = arith.addf %12, %14 : vector<64x256xf32>
    %c0_12 = arith.constant 0 : index
    %c0_13 = arith.constant 0 : index
    %16 = vector.load %arg8[%c0_12, %c0_13] : memref<64x128xf32, #tpu.memory_space<vmem>>, vector<64x128xf32>
    %17 = arith.mulf %10, %16 : vector<64x128xf32>
    %c0_14 = arith.constant 0 : index
    %c0_15 = arith.constant 0 : index
    %18 = vector.load %arg6[%c0_14, %c0_15] : memref<128x256xf32, #tpu.memory_space<vmem>>, vector<128x256xf32>
    %cst_16 = arith.constant dense<0.000000e+00> : vector<64x256xf32>
    %19 = tpu.matmul %17, %18, %cst_16 {dimension_numbers = #tpu.dot_dimension_numbers<[1], [0], [0], [1], [0, 0, 1, 1], [], []>} : vector<64x128xf32>, vector<128x256xf32>, vector<64x256xf32> -> vector<64x256xf32>
    %c0_17 = arith.constant 0 : index
    %c0_18 = arith.constant 0 : index
    %20 = vector.load %arg7[%c0_17, %c0_18] : memref<1x256xf32, #tpu.memory_space<vmem>>, vector<1x256xf32>
    %21 = vector.broadcast %20 : vector<1x256xf32> to vector<64x256xf32>
    %22 = arith.addf %19, %21 : vector<64x256xf32>
    %c0_19 = arith.constant 0 : index
    %c0_20 = arith.constant 0 : index
    %23 = vector.load %arg9[%c0_19, %c0_20] : memref<64x256xf32, #tpu.memory_space<vmem>>, vector<64x256xf32>
    %24 = arith.mulf %22, %23 : vector<64x256xf32>
    %25 = arith.addf %15, %24 : vector<64x256xf32>
    %cst_21 = arith.constant 0.000000e+00 : f32
    %26 = vector.broadcast %cst_21 : f32 to vector<64x256xf32>
    %27 = arith.cmpf ogt, %25, %26 : vector<64x256xf32>
    %cst_22 = arith.constant 0.00999999977 : f32
    %28 = vector.broadcast %cst_22 : f32 to vector<64x256xf32>
    %29 = arith.mulf %28, %25 : vector<64x256xf32>
    %30 = arith.select %27, %25, %29 : vector<64x256xi1>, vector<64x256xf32>
    %c0_23 = arith.constant 0 : index
    %c0_24 = arith.constant 0 : index
    %31 = vector.load %arg10[%c0_23, %c0_24] : memref<256x32xf32, #tpu.memory_space<vmem>>, vector<256x32xf32>
    %cst_25 = arith.constant dense<0.000000e+00> : vector<64x32xf32>
    %32 = tpu.matmul %30, %31, %cst_25 {dimension_numbers = #tpu.dot_dimension_numbers<[1], [0], [0], [1], [0, 0, 1, 1], [], []>} : vector<64x256xf32>, vector<256x32xf32>, vector<64x32xf32> -> vector<64x32xf32>
    %c0_26 = arith.constant 0 : index
    %c0_27 = arith.constant 0 : index
    %33 = vector.load %arg11[%c0_26, %c0_27] : memref<1x32xf32, #tpu.memory_space<vmem>>, vector<1x32xf32>
    %34 = vector.broadcast %33 : vector<1x32xf32> to vector<64x32xf32>
    %35 = arith.addf %32, %34 : vector<64x32xf32>
    %c0_28 = arith.constant 0 : index
    %c0_29 = arith.constant 0 : index
    %36 = vector.load %arg14[%c0_28, %c0_29] : memref<64x256xf32, #tpu.memory_space<vmem>>, vector<64x256xf32>
    %37 = arith.mulf %30, %36 : vector<64x256xf32>
    %c0_30 = arith.constant 0 : index
    %c0_31 = arith.constant 0 : index
    %38 = vector.load %arg12[%c0_30, %c0_31] : memref<256x32xf32, #tpu.memory_space<vmem>>, vector<256x32xf32>
    %cst_32 = arith.constant dense<0.000000e+00> : vector<64x32xf32>
    %39 = tpu.matmul %37, %38, %cst_32 {dimension_numbers = #tpu.dot_dimension_numbers<[1], [0], [0], [1], [0, 0, 1, 1], [], []>} : vector<64x256xf32>, vector<256x32xf32>, vector<64x32xf32> -> vector<64x32xf32>
    %c0_33 = arith.constant 0 : index
    %c0_34 = arith.constant 0 : index
    %40 = vector.load %arg13[%c0_33, %c0_34] : memref<1x32xf32, #tpu.memory_space<vmem>>, vector<1x32xf32>
    %41 = vector.broadcast %40 : vector<1x32xf32> to vector<64x32xf32>
    %42 = arith.addf %39, %41 : vector<64x32xf32>
    %c0_35 = arith.constant 0 : index
    %c0_36 = arith.constant 0 : index
    %43 = vector.load %arg15[%c0_35, %c0_36] : memref<64x32xf32, #tpu.memory_space<vmem>>, vector<64x32xf32>
    %44 = arith.mulf %42, %43 : vector<64x32xf32>
    %45 = arith.addf %35, %44 : vector<64x32xf32>
    %c0_37 = arith.constant 0 : index
    %c0_38 = arith.constant 0 : index
    %46 = vector.load %arg16[%c0_37, %c0_38] : memref<64x32xf32, #tpu.memory_space<vmem>>, vector<64x32xf32>
    tpu.vector_store %arg16[%c0_37, %c0_38], %45 {strides = array<i32>} : memref<64x32xf32, #tpu.memory_space<vmem>>, vector<64x32xf32>,
    return
  }
  func.func @transform_0(%arg0: i32) -> (i32, i32) {
    %c0_i32 = arith.constant 0 : i32
    %c0_i32_0 = arith.constant 0 : i32
    return %arg0, %c0_i32 : i32, i32
  }
  func.func @transform_1(%arg0: i32) -> (i32, i32) {
    %c0_i32 = arith.constant 0 : i32
    %c0_i32_0 = arith.constant 0 : i32
    %c0_i32_1 = arith.constant 0 : i32
    return %c0_i32, %c0_i32_0 : i32, i32
  }
  func.func @transform_2(%arg0: i32) -> (i32, i32) {
    %c0_i32 = arith.constant 0 : i32
    %c0_i32_0 = arith.constant 0 : i32
    %c0_i32_1 = arith.constant 0 : i32
    return %c0_i32, %c0_i32_0 : i32, i32
  }
  func.func @transform_3(%arg0: i32) -> (i32, i32) {
    %c0_i32 = arith.constant 0 : i32
    %c0_i32_0 = arith.constant 0 : i32
    %c0_i32_1 = arith.constant 0 : i32
    return %c0_i32, %c0_i32_0 : i32, i32
  }
  func.func @transform_4(%arg0: i32) -> (i32, i32) {
    %c0_i32 = arith.constant 0 : i32
    %c0_i32_0 = arith.constant 0 : i32
    %c0_i32_1 = arith.constant 0 : i32
    return %c0_i32, %c0_i32_0 : i32, i32
  }
  func.func @transform_5(%arg0: i32) -> (i32, i32) {
    %c0_i32 = arith.constant 0 : i32
    %c0_i32_0 = arith.constant 0 : i32
    %c0_i32_1 = arith.constant 0 : i32
    return %c0_i32, %c0_i32_0 : i32, i32
  }
  func.func @transform_6(%arg0: i32) -> (i32, i32) {
    %c0_i32 = arith.constant 0 : i32
    %c0_i32_0 = arith.constant 0 : i32
    %c0_i32_1 = arith.constant 0 : i32
    return %c0_i32, %c0_i32_0 : i32, i32
  }
  func.func @transform_7(%arg0: i32) -> (i32, i32) {
    %c0_i32 = arith.constant 0 : i32
    %c0_i32_0 = arith.constant 0 : i32
    return %arg0, %c0_i32 : i32, i32
  }
  func.func @transform_8(%arg0: i32) -> (i32, i32) {
    %c0_i32 = arith.constant 0 : i32
    %c0_i32_0 = arith.constant 0 : i32
    return %arg0, %c0_i32 : i32, i32
  }
  func.func @transform_9(%arg0: i32) -> (i32, i32) {
    %c0_i32 = arith.constant 0 : i32
    %c0_i32_0 = arith.constant 0 : i32
    %c0_i32_1 = arith.constant 0 : i32
    return %c0_i32, %c0_i32_0 : i32, i32
  }
  func.func @transform_10(%arg0: i32) -> (i32, i32) {
    %c0_i32 = arith.constant 0 : i32
    %c0_i32_0 = arith.constant 0 : i32
    %c0_i32_1 = arith.constant 0 : i32
    return %c0_i32, %c0_i32_0 : i32, i32
  }
  func.func @transform_11(%arg0: i32) -> (i32, i32) {
    %c0_i32 = arith.constant 0 : i32
    %c0_i32_0 = arith.constant 0 : i32
    %c0_i32_1 = arith.constant 0 : i32
    return %c0_i32, %c0_i32_0 : i32, i32
  }
  func.func @transform_12(%arg0: i32) -> (i32, i32) {
    %c0_i32 = arith.constant 0 : i32
    %c0_i32_0 = arith.constant 0 : i32
    %c0_i32_1 = arith.constant 0 : i32
    return %c0_i32, %c0_i32_0 : i32, i32
  }
  func.func @transform_13(%arg0: i32) -> (i32, i32) {
    %c0_i32 = arith.constant 0 : i32
    %c0_i32_0 = arith.constant 0 : i32
    return %arg0, %c0_i32 : i32, i32
  }
  func.func @transform_14(%arg0: i32) -> (i32, i32) {
    %c0_i32 = arith.constant 0 : i32
    %c0_i32_0 = arith.constant 0 : i32
    return %arg0, %c0_i32 : i32, i32
  }
  func.func @transform_15(%arg0: i32) -> (i32, i32) {
    %c0_i32 = arith.constant 0 : i32
    %c0_i32_0 = arith.constant 0 : i32
    return %arg0, %c0_i32 : i32, i32
  }
}

</mosaic_0001>

<llo_original>
// kernel: tpu_custom_call.1
$region0: #{tpu_custom_call.1}
  #allocation0 [shape = 'u32[]', space=smem, size = 0x4, offset = 0x4, fixed_abs, tag = 'smem constant byte address 0x4 - core index']
  #allocation1 [shape = 'u32[144,128]{1,0:T(1,128)}', space=vmem, size = 0x12000, scoped, tag = 'internal scratch']
  %s0 = inlined_call_operand.vmem [shape: f32[64,8], index: 0, kind: input, shape index: {}]
  %s1 = inlined_call_operand.hbm [shape: f32[8,128], index: 1, kind: input, shape index: {}]
  %s2 = inlined_call_operand.hbm [shape: f32[1,128], index: 2, kind: input, shape index: {}]
  %s3 = inlined_call_operand.vmem [shape: f32[128,256], index: 3, kind: input, shape index: {}]
  %s4 = inlined_call_operand.vmem [shape: f32[1,256], index: 4, kind: input, shape index: {}]
  %s5 = inlined_call_operand.vmem [shape: f32[128,256], index: 5, kind: input, shape index: {}]
  %s6 = inlined_call_operand.hbm [shape: f32[1,256], index: 6, kind: input, shape index: {}]
  %s7 = inlined_call_operand.hbm [shape: f32[64,128], index: 7, kind: input, shape index: {}]
  %s8 = inlined_call_operand.vmem [shape: f32[64,256], index: 8, kind: input, shape index: {}]
  %s9 = inlined_call_operand.vmem [shape: f32[256,32], index: 9, kind: input, shape index: {}]
  %s10 = inlined_call_operand.vmem [shape: f32[1,32], index: 10, kind: input, shape index: {}]
  %s11 = inlined_call_operand.vmem [shape: f32[256,32], index: 11, kind: input, shape index: {}]
  %s12 = inlined_call_operand.vmem [shape: f32[1,32], index: 12, kind: input, shape index: {}]
  %s13 = inlined_call_operand.vmem [shape: f32[64,256], index: 13, kind: input, shape index: {}]
  %s14 = inlined_call_operand.vmem [shape: f32[64,32], index: 14, kind: input, shape index: {}]
  %s15 = inlined_call_operand.vmem [shape: f32[64,32], index: 15, kind: output, shape index: {}]
  %s16 = sld [smem:[#allocation0]]
  $region86: #{tpu_custom_call.1} parent=0
    _
  %s18 = ssub.s32 1, %s16
  %s19 = scalar_select 0, %s18, %s16
  $region1: #{tpu_custom_call.1} parent=0
    #allocation2 [shape = 'u8[4096]{0}', space=vmem, size = 0x1000, scoped, tag = 'input window, operand 1, single buffered']
    #allocation3 [shape = 's32[1]{0}', space=sflag, size = 0x4, scoped, tag = 'scoped memory for tpu_custom_call.1']
    #allocation4 [shape = 'u8[512]{0}', space=vmem, size = 0x400, scoped, tag = 'input window, operand 2, single buffered']
    #allocation5 [shape = 's32[1]{0}', space=sflag, size = 0x4, scoped, tag = 'scoped memory for tpu_custom_call.1']
    #allocation6 [shape = 'u8[1024]{0}', space=vmem, size = 0x400, scoped, tag = 'input window, operand 6, single buffered']
    #allocation7 [shape = 'u8[32768]{0}', space=vmem, size = 0x8000, scoped, tag = 'input window, operand 7, single buffered']
    #allocation8 [shape = 's32[1]{0}', space=sflag, size = 0x4, scoped, tag = 'scoped memory for tpu_custom_call.1']
    %20 = vsyncpa [#allocation3], 0
    %21 = vsyncpa [#allocation5], 0
    %22 = vsyncpa [#allocation8], 0
    // Predicated region
    $region2: #{tpu_custom_call.1} parent=1 // pred_check
      _
    $region3: #{tpu_custom_call.1} parent=1 // pred_check_branch
      %24 = sbr.rel (0) target = $region5
    $region4: #{tpu_custom_call.1} parent=1 // pred_region
      _
    $region5: #{tpu_custom_call.1} parent=1 // pred_fallthru
      _
    // Predicated region
    $region6: #{tpu_custom_call.1} parent=1 // pred_check
      _
    $region7: #{tpu_custom_call.1} parent=1 // pred_check_branch
      %26 = sbr.rel (0) target = $region9
    $region8: #{tpu_custom_call.1} parent=1 // pred_region
      %s28 = ssub.s32 128, 128
      %29 = vsyncadd [#allocation3], %s28
      %s31 = sshll.u32 [#allocation2], 4
      %s32 = int_to_ptr.vmem [resolvable:$true] %s31
      %34 = dma.hbm_to_vmem [thread:$0]  %s1, 128, %s32, [#allocation3]
    $region9: #{tpu_custom_call.1} parent=1 // pred_fallthru
      _
    // Predicated region
    $region10: #{tpu_custom_call.1} parent=1 // pred_check
      _
    $region11: #{tpu_custom_call.1} parent=1 // pred_check_branch
      %36 = sbr.rel (0) target = $region13
    $region12: #{tpu_custom_call.1} parent=1 // pred_region
      %s38 = ssub.s32 16, 16
      %39 = vsyncadd [#allocation5], %s38
      %s41 = sshll.u32 [#allocation4], 4
      %s42 = int_to_ptr.vmem [resolvable:$true] %s41
      %44 = dma.hbm_to_vmem [thread:$0]  %s2, 16, %s42, [#allocation5]
    $region13: #{tpu_custom_call.1} parent=1 // pred_fallthru
      _
    // Predicated region
    $region14: #{tpu_custom_call.1} parent=1 // pred_check
      _
    $region15: #{tpu_custom_call.1} parent=1 // pred_check_branch
      %46 = sbr.rel (0) target = $region17
    $region16: #{tpu_custom_call.1} parent=1 // pred_region
      _
    $region17: #{tpu_custom_call.1} parent=1 // pred_fallthru
      _
    // Predicated region
    $region18: #{tpu_custom_call.1} parent=1 // pred_check
      _
    $region19: #{tpu_custom_call.1} parent=1 // pred_check_branch
      %48 = sbr.rel (0) target = $region21
    $region20: #{tpu_custom_call.1} parent=1 // pred_region
      _
    $region21: #{tpu_custom_call.1} parent=1 // pred_fallthru
      _
    // Predicated region
    $region22: #{tpu_custom_call.1} parent=1 // pred_check
      _
    $region23: #{tpu_custom_call.1} parent=1 // pred_check_branch
      %50 = sbr.rel (0) target = $region25
    $region24: #{tpu_custom_call.1} parent=1 // pred_region
      _
    $region25: #{tpu_custom_call.1} parent=1 // pred_fallthru
      _
    // Predicated region
    $region26: #{tpu_custom_call.1} parent=1 // pred_check
      _
    $region27: #{tpu_custom_call.1} parent=1 // pred_check_branch
      %52 = sbr.rel (0) target = $region29
    $region28: #{tpu_custom_call.1} parent=1 // pred_region
      %s54 = ssub.s32 32, 32
      %55 = vsyncadd [#allocation5], %s54
      %s57 = sshll.u32 [#allocation6], 4
      %s58 = int_to_ptr.vmem [resolvable:$true] %s57
      %60 = dma.hbm_to_vmem [thread:$0]  %s6, 32, %s58, [#allocation5]
    $region29: #{tpu_custom_call.1} parent=1 // pred_fallthru
      _
    // Predicated region
    $region30: #{tpu_custom_call.1} parent=1 // pred_check
      _
    $region31: #{tpu_custom_call.1} parent=1 // pred_check_branch
      %62 = sbr.rel (0) target = $region33
    $region32: #{tpu_custom_call.1} parent=1 // pred_region
      %s64 = ssub.s32 1024, 1024
      %65 = vsyncadd [#allocation8], %s64
      %s66 = sshll.u32 [#allocation7], 4
      %s67 = int_to_ptr.vmem [resolvable:$true] %s66
      %72 = dma.hbm_to_vmem [thread:$0]  %s7, 1024, %s67, [#allocation8], 128, 128, 8
    $region33: #{tpu_custom_call.1} parent=1 // pred_fallthru
      _
    // Predicated region
    $region34: #{tpu_custom_call.1} parent=1 // pred_check
      _
    $region35: #{tpu_custom_call.1} parent=1 // pred_check_branch
      %74 = sbr.rel (0) target = $region37
    $region36: #{tpu_custom_call.1} parent=1 // pred_region
      _
    $region37: #{tpu_custom_call.1} parent=1 // pred_fallthru
      _
    // Predicated region
    $region38: #{tpu_custom_call.1} parent=1 // pred_check
      _
    $region39: #{tpu_custom_call.1} parent=1 // pred_check_branch
      %76 = sbr.rel (0) target = $region41
    $region40: #{tpu_custom_call.1} parent=1 // pred_region
      _
    $region41: #{tpu_custom_call.1} parent=1 // pred_fallthru
      _
    // Predicated region
    $region42: #{tpu_custom_call.1} parent=1 // pred_check
      _
    $region43: #{tpu_custom_call.1} parent=1 // pred_check_branch
      %78 = sbr.rel (0) target = $region45
    $region44: #{tpu_custom_call.1} parent=1 // pred_region
      _
    $region45: #{tpu_custom_call.1} parent=1 // pred_fallthru
      _
    // Predicated region
    $region46: #{tpu_custom_call.1} parent=1 // pred_check
      _
    $region47: #{tpu_custom_call.1} parent=1 // pred_check_branch
      %80 = sbr.rel (0) target = $region49
    $region48: #{tpu_custom_call.1} parent=1 // pred_region
      _
    $region49: #{tpu_custom_call.1} parent=1 // pred_fallthru
      _
    // Predicated region
    $region50: #{tpu_custom_call.1} parent=1 // pred_check
      _
    $region51: #{tpu_custom_call.1} parent=1 // pred_check_branch
      %82 = sbr.rel (0) target = $region53
    $region52: #{tpu_custom_call.1} parent=1 // pred_region
      _
    $region53: #{tpu_custom_call.1} parent=1 // pred_fallthru
      _
    // Predicated region
    $region54: #{tpu_custom_call.1} parent=1 // pred_check
      _
    $region55: #{tpu_custom_call.1} parent=1 // pred_check_branch
      %84 = sbr.rel (0) target = $region57
    $region56: #{tpu_custom_call.1} parent=1 // pred_region
      _
    $region57: #{tpu_custom_call.1} parent=1 // pred_fallthru
      _
    // Predicated region
    $region58: #{tpu_custom_call.1} parent=1 // pred_check
      _
    $region59: #{tpu_custom_call.1} parent=1 // pred_check_branch
      %86 = sbr.rel (0) target = $region61
    $region60: #{tpu_custom_call.1} parent=1 // pred_region
      _
    $region61: #{tpu_custom_call.1} parent=1 // pred_fallthru
      _
    // Predicated region
    $region62: #{tpu_custom_call.1} parent=1 // pred_check
      _
    $region63: #{tpu_custom_call.1} parent=1 // pred_check_branch
      %88 = sbr.rel (0) target = $region65
    $region64: #{tpu_custom_call.1} parent=1 // pred_region
      %89 = dma.done [#allocation3], 128
    $region65: #{tpu_custom_call.1} parent=1 // pred_fallthru
      _
    // Predicated region
    $region66: #{tpu_custom_call.1} parent=1 // pred_check
      _
    $region67: #{tpu_custom_call.1} parent=1 // pred_check_branch
      %91 = sbr.rel (0) target = $region69
    $region68: #{tpu_custom_call.1} parent=1 // pred_region
      %92 = dma.done [#allocation5], 16
    $region69: #{tpu_custom_call.1} parent=1 // pred_fallthru
      _
    // Predicated region
    $region70: #{tpu_custom_call.1} parent=1 // pred_check
      _
    $region71: #{tpu_custom_call.1} parent=1 // pred_check_branch
      %94 = sbr.rel (0) target = $region73
    $region72: #{tpu_custom_call.1} parent=1 // pred_region
      %95 = dma.done [#allocation5], 32
    $region73: #{tpu_custom_call.1} parent=1 // pred_fallthru
      _
    // Predicated region
    $region74: #{tpu_custom_call.1} parent=1 // pred_check
      _
    $region75: #{tpu_custom_call.1} parent=1 // pred_check_branch
      %97 = sbr.rel (0) target = $region77
    $region76: #{tpu_custom_call.1} parent=1 // pred_region
      %98 = dma.done [#allocation8], 1024
    $region77: #{tpu_custom_call.1} parent=1 // pred_fallthru
      _
    %v99 = vld [vmem:[%s0] sm:$0xff]
    %v100 = vld [vmem:[%s0 + $0x8] sm:$0xff]
    %v101 = vld [vmem:[%s0 + $0x10] sm:$0xff]
    %v102 = vld [vmem:[%s0 + $0x18] sm:$0xff]
    %v103 = vld [vmem:[%s0 + $0x20] sm:$0xff]
    %v104 = vld [vmem:[%s0 + $0x28] sm:$0xff]
    %v105 = vld [vmem:[%s0 + $0x30] sm:$0xff]
    %v106 = vld [vmem:[%s0 + $0x38] sm:$0xff]
    %v107 = vld [vmem:[#allocation2] sm:$0xff]
    %v108 = vld [vmem:[#allocation4] sm:$0x1]
    %v110 = vlaneseq
    %v111 = vshrl.u32 %v110, 7
    %v112 = vsub.s32 0, %v111
    %v113 = vrot.slane %v108, %v112
    %vm115 = vcmask 64512
    %v117 = vsel %vm115, %v99, 0
    %v120 = vsel %vm115, %v100, 0
    %v123 = vsel %vm115, %v101, 0
    %v126 = vsel %vm115, %v102, 0
    %v129 = vsel %vm115, %v103, 0
    %v132 = vsel %vm115, %v104, 0
    %v135 = vsel %vm115, %v105, 0
    %v138 = vsel %vm115, %v106, 0
    %140 = vmatprep.subr.mxu0 0.0
    %141 = vmatpush1.msra.mxu0 %v107
    %142 = vmatprep.subr.mxu0 0.0
    %143 = vmatpush1.msra.mxu0 0.0
    %144 = vmatprep.subr.mxu0 0.0
    %145 = vmatpush1.msra.mxu0 0.0
    %146 = vmatprep.subr.mxu0 0.0
    %147 = vmatpush1.msra.mxu0 0.0
    %148 = vmatprep.subr.mxu0 0.0
    %149 = vmatpush1.msra.mxu0 0.0
    %150 = vmatprep.subr.mxu0 0.0
    %151 = vmatpush1.msra.mxu0 0.0
    %152 = vmatprep.subr.mxu0 0.0
    %153 = vmatpush1.msra.mxu0 0.0
    %154 = vmatprep.subr.mxu0 0.0
    %155 = vmatpush1.msra.mxu0 0.0
    %156 = vmatprep.subr.mxu0 0.0
    %157 = vmatpush1.msra.mxu0 0.0
    %158 = vmatprep.subr.mxu0 0.0
    %159 = vmatpush1.msra.mxu0 0.0
    %160 = vmatprep.subr.mxu0 0.0
    %161 = vmatpush1.msra.mxu0 0.0
    %162 = vmatprep.subr.mxu0 0.0
    %163 = vmatpush1.msra.mxu0 0.0
    %164 = vmatprep.subr.mxu0 0.0
    %165 = vmatpush1.msra.mxu0 0.0
    %166 = vmatprep.subr.mxu0 0.0
    %167 = vmatpush1.msra.mxu0 0.0
    %168 = vmatprep.subr.mxu0 0.0
    %169 = vmatpush1.msra.mxu0 0.0
    %170 = vmatprep.subr.mxu0 0.0
    %171 = vmatpush1.msra.mxu0 0.0
    %172 = vmatprep.subr.mxu0 0.0
    %173 = vmatpush1.msra.mxu0 0.0
    %174 = vmatprep.subr.mxu0 0.0
    %175 = vmatpush1.msra.mxu0 0.0
    %176 = vmatprep.subr.mxu0 0.0
    %177 = vmatpush1.msra.mxu0 0.0
    %178 = vmatprep.subr.mxu0 0.0
    %179 = vmatpush1.msra.mxu0 0.0
    %180 = vmatprep.subr.mxu0 0.0
    %181 = vmatpush1.msra.mxu0 0.0
    %182 = vmatprep.subr.mxu0 0.0
    %183 = vmatpush1.msra.mxu0 0.0
    %184 = vmatprep.subr.mxu0 0.0
    %185 = vmatpush1.msra.mxu0 0.0
    %186 = vmatprep.subr.mxu0 0.0
    %187 = vmatpush1.msra.mxu0 0.0
    %188 = vmatprep.subr.mxu0 0.0
    %189 = vmatpush1.msra.mxu0 0.0
    %190 = vmatprep.subr.mxu0 0.0
    %191 = vmatpush1.msra.mxu0 0.0
    %192 = vmatprep.subr.mxu0 0.0
    %193 = vmatpush1.msra.mxu0 0.0
    %194 = vmatprep.subr.mxu0 0.0
    %195 = vmatpush1.msra.mxu0 0.0
    %196 = vmatprep.subr.mxu0 0.0
    %197 = vmatpush1.msra.mxu0 0.0
    %198 = vmatprep.subr.mxu0 0.0
    %199 = vmatpush1.msra.mxu0 0.0
    %200 = vmatprep.subr.mxu0 0.0
    %201 = vmatpush1.msra.mxu0 0.0
    %202 = vmatprep.subr.mxu0 0.0
    %203 = vmatpush1.msra.mxu0 0.0
    %204 = vmatprep.mubr.f32.mxu0 0.0
    %205 = vmatmul.mubr.f32.gmra.mrb[0].mxu0 %v117
    %v206 = vpop.f32.mrb[0].mxu0
    %v207 = vadd.f32 %v113, %v206
    %v208 = vpop.f32.mrb[0].mxu0
    %209 = vmatprep.mubr.f32.mxu0 0.0
    %210 = vmatmul.mubr.f32.gmra.mrb[0].mxu0 %v120
    %v211 = vpop.f32.mrb[0].mxu0
    %v212 = vadd.f32 %v113, %v211
    %v213 = vpop.f32.mrb[0].mxu0
    %214 = vmatprep.mubr.f32.mxu0 0.0
    %215 = vmatmul.mubr.f32.gmra.mrb[0].mxu0 %v123
    %v216 = vpop.f32.mrb[0].mxu0
    %v217 = vadd.f32 %v113, %v216
    %v218 = vpop.f32.mrb[0].mxu0
    %219 = vmatprep.mubr.f32.mxu0 0.0
    %220 = vmatmul.mubr.f32.gmra.mrb[0].mxu0 %v126
    %v221 = vpop.f32.mrb[0].mxu0
    %v222 = vadd.f32 %v113, %v221
    %v223 = vpop.f32.mrb[0].mxu0
    %224 = vmatprep.mubr.f32.mxu0 0.0
    %225 = vmatmul.mubr.f32.gmra.mrb[0].mxu0 %v129
    %v226 = vpop.f32.mrb[0].mxu0
    %v227 = vadd.f32 %v113, %v226
    %v228 = vpop.f32.mrb[0].mxu0
    %229 = vmatprep.mubr.f32.mxu0 0.0
    %230 = vmatmul.mubr.f32.gmra.mrb[0].mxu0 %v132
    %v231 = vpop.f32.mrb[0].mxu0
    %v232 = vadd.f32 %v113, %v231
    %v233 = vpop.f32.mrb[0].mxu0
    %234 = vmatprep.mubr.f32.mxu0 0.0
    %235 = vmatmul.mubr.f32.gmra.mrb[0].mxu0 %v135
    %v236 = vpop.f32.mrb[0].mxu0
    %v237 = vadd.f32 %v113, %v236
    %v238 = vpop.f32.mrb[0].mxu0
    %239 = vmatprep.mubr.f32.mxu0 0.0
    %240 = vmatmul.mubr.f32.gmra.mrb[0].mxu0 %v138
    %v241 = vpop.f32.mrb[0].mxu0
    %v242 = vadd.f32 %v113, %v241
    %v243 = vpop.f32.mrb[0].mxu0
    %244 = vdwg.mxu0
    %vm245 = vcmp.gt.f32.partialorder %v207, 0.0
    %vm246 = vcmp.gt.f32.partialorder %v212, 0.0
    %vm247 = vcmp.gt.f32.partialorder %v217, 0.0
    %vm248 = vcmp.gt.f32.partialorder %v222, 0.0
    %vm249 = vcmp.gt.f32.partialorder %v227, 0.0
    %vm250 = vcmp.gt.f32.partialorder %v232, 0.0
    %vm251 = vcmp.gt.f32.partialorder %v237, 0.0
    %vm252 = vcmp.gt.f32.partialorder %v242, 0.0
    %v253 = vmul.f32 %v207, 0.01
    %v254 = vmul.f32 %v212, 0.01
    %v255 = vmul.f32 %v217, 0.01
    %v256 = vmul.f32 %v222, 0.01
    %v257 = vmul.f32 %v227, 0.01
    %v258 = vmul.f32 %v232, 0.01
    %v259 = vmul.f32 %v237, 0.01
    %v260 = vmul.f32 %v242, 0.01
    %v261 = vsel %vm245, %v207, %v253
    %v262 = vsel %vm246, %v212, %v254
    %v263 = vsel %vm247, %v217, %v255
    %v264 = vsel %vm248, %v222, %v256
    %v265 = vsel %vm249, %v227, %v257
    %v266 = vsel %vm250, %v232, %v258
    %v267 = vsel %vm251, %v237, %v259
    %v268 = vsel %vm252, %v242, %v260
    %v269 = vld [vmem:[%s3] sm:$0xff]
    %v270 = vld [vmem:[%s3 + $0x8] sm:$0xff]
    %v271 = vld [vmem:[%s3 + $0x10] sm:$0xff]
    %v272 = vld [vmem:[%s3 + $0x18] sm:$0xff]
    %v273 = vld [vmem:[%s3 + $0x20] sm:$0xff]
    %v274 = vld [vmem:[%s3 + $0x28] sm:$0xff]
    %v275 = vld [vmem:[%s3 + $0x30] sm:$0xff]
    %v276 = vld [vmem:[%s3 + $0x38] sm:$0xff]
    %v277 = vld [vmem:[%s3 + $0x40] sm:$0xff]
    %v278 = vld [vmem:[%s3 + $0x48] sm:$0xff]
    %v279 = vld [vmem:[%s3 + $0x50] sm:$0xff]
    %v280 = vld [vmem:[%s3 + $0x58] sm:$0xff]
    %v281 = vld [vmem:[%s3 + $0x60] sm:$0xff]
    %v282 = vld [vmem:[%s3 + $0x68] sm:$0xff]
    %v283 = vld [vmem:[%s3 + $0x70] sm:$0xff]
    %v284 = vld [vmem:[%s3 + $0x78] sm:$0xff]
    %v285 = vld [vmem:[%s3 + $0x80] sm:$0xff]
    %v286 = vld [vmem:[%s3 + $0x88] sm:$0xff]
    %v287 = vld [vmem:[%s3 + $0x90] sm:$0xff]
    %v288 = vld [vmem:[%s3 + $0x98] sm:$0xff]
    %v289 = vld [vmem:[%s3 + $0xa0] sm:$0xff]
    %v290 = vld [vmem:[%s3 + $0xa8] sm:$0xff]
    %v291 = vld [vmem:[%s3 + $0xb0] sm:$0xff]
    %v292 = vld [vmem:[%s3 + $0xb8] sm:$0xff]
    %v293 = vld [vmem:[%s3 + $0xc0] sm:$0xff]
    %v294 = vld [vmem:[%s3 + $0xc8] sm:$0xff]
    %v295 = vld [vmem:[%s3 + $0xd0] sm:$0xff]
    %v296 = vld [vmem:[%s3 + $0xd8] sm:$0xff]
    %v297 = vld [vmem:[%s3 + $0xe0] sm:$0xff]
    %v298 = vld [vmem:[%s3 + $0xe8] sm:$0xff]
    %v299 = vld [vmem:[%s3 + $0xf0] sm:$0xff]
    %v300 = vld [vmem:[%s3 + $0xf8] sm:$0xff]
    %v301 = vld [vmem:[%s4] sm:$0x3]
    %v303 = vlaneseq
    %v304 = vshrl.u32 %v303, 7
    %v305 = vsub.s32 0, %v304
    %v306 = vrot.slane %v301, %v305
    %v307 = vlaneseq
    %v308 = vshrl.u32 %v307, 7
    %v309 = vsub.s32 1, %v308
    %v310 = vrot.slane %v301, %v309
    %313 = vmatprep.subr.mxu0 %v270
    %314 = vmatpush1.msra.mxu0 %v269
    %315 = vmatprep.subr.mxu0 %v272
    %316 = vmatpush1.msra.mxu0 %v271
    %317 = vmatprep.subr.mxu0 %v274
    %318 = vmatpush1.msra.mxu0 %v273
    %319 = vmatprep.subr.mxu0 %v276
    %320 = vmatpush1.msra.mxu0 %v275
    %321 = vmatprep.subr.mxu0 %v278
    %322 = vmatpush1.msra.mxu0 %v277
    %323 = vmatprep.subr.mxu0 %v280
    %324 = vmatpush1.msra.mxu0 %v279
    %325 = vmatprep.subr.mxu0 %v282
    %326 = vmatpush1.msra.mxu0 %v281
    %327 = vmatprep.subr.mxu0 %v284
    %328 = vmatpush1.msra.mxu0 %v283
    %329 = vmatprep.subr.mxu0 %v286
    %330 = vmatpush1.msra.mxu0 %v285
    %331 = vmatprep.subr.mxu0 %v288
    %332 = vmatpush1.msra.mxu0 %v287
    %333 = vmatprep.subr.mxu0 %v290
    %334 = vmatpush1.msra.mxu0 %v289
    %335 = vmatprep.subr.mxu0 %v292
    %336 = vmatpush1.msra.mxu0 %v291
    %337 = vmatprep.subr.mxu0 %v294
    %338 = vmatpush1.msra.mxu0 %v293
    %339 = vmatprep.subr.mxu0 %v296
    %340 = vmatpush1.msra.mxu0 %v295
    %341 = vmatprep.subr.mxu0 %v298
    %342 = vmatpush1.msra.mxu0 %v297
    %343 = vmatprep.subr.mxu0 %v300
    %344 = vmatpush1.msra.mxu0 %v299
    %345 = vmatprep.subr.mxu0 0.0
    %346 = vmatpush1.msra.mxu0 0.0
    %347 = vmatprep.subr.mxu0 0.0
    %348 = vmatpush1.msra.mxu0 0.0
    %349 = vmatprep.subr.mxu0 0.0
    %350 = vmatpush1.msra.mxu0 0.0
    %351 = vmatprep.subr.mxu0 0.0
    %352 = vmatpush1.msra.mxu0 0.0
    %353 = vmatprep.subr.mxu0 0.0
    %354 = vmatpush1.msra.mxu0 0.0
    %355 = vmatprep.subr.mxu0 0.0
    %356 = vmatpush1.msra.mxu0 0.0
    %357 = vmatprep.subr.mxu0 0.0
    %358 = vmatpush1.msra.mxu0 0.0
    %359 = vmatprep.subr.mxu0 0.0
    %360 = vmatpush1.msra.mxu0 0.0
    %361 = vmatprep.subr.mxu0 0.0
    %362 = vmatpush1.msra.mxu0 0.0
    %363 = vmatprep.subr.mxu0 0.0
    %364 = vmatpush1.msra.mxu0 0.0
    %365 = vmatprep.subr.mxu0 0.0
    %366 = vmatpush1.msra.mxu0 0.0
    %367 = vmatprep.subr.mxu0 0.0
    %368 = vmatpush1.msra.mxu0 0.0
    %369 = vmatprep.subr.mxu0 0.0
    %370 = vmatpush1.msra.mxu0 0.0
    %371 = vmatprep.subr.mxu0 0.0
    %372 = vmatpush1.msra.mxu0 0.0
    %373 = vmatprep.subr.mxu0 0.0
    %374 = vmatpush1.msra.mxu0 0.0
    %375 = vmatprep.subr.mxu0 0.0
    %376 = vmatpush1.msra.mxu0 0.0
    %377 = vmatprep.mubr.f32.mxu0 0.0
    %378 = vmatmul.mubr.f32.gmra.mrb[0].mxu0 %v261
    %v379 = vpop.f32.mrb[0].mxu0
    %v380 = vadd.f32 %v306, %v379
    %v381 = vpop.f32.mrb[0].mxu0
    %v382 = vadd.f32 %v310, %v381
    %383 = vmatprep.mubr.f32.mxu0 0.0
    %384 = vmatmul.mubr.f32.gmra.mrb[0].mxu0 %v262
    %v385 = vpop.f32.mrb[0].mxu0
    %v386 = vadd.f32 %v306, %v385
    %v387 = vpop.f32.mrb[0].mxu0
    %v388 = vadd.f32 %v310, %v387
    %389 = vmatprep.mubr.f32.mxu0 0.0
    %390 = vmatmul.mubr.f32.gmra.mrb[0].mxu0 %v263
    %v391 = vpop.f32.mrb[0].mxu0
    %v392 = vadd.f32 %v306, %v391
    %v393 = vpop.f32.mrb[0].mxu0
    %v394 = vadd.f32 %v310, %v393
    %395 = vmatprep.mubr.f32.mxu0 0.0
    %396 = vmatmul.mubr.f32.gmra.mrb[0].mxu0 %v264
    %v397 = vpop.f32.mrb[0].mxu0
    %v398 = vadd.f32 %v306, %v397
    %v399 = vpop.f32.mrb[0].mxu0
    %v400 = vadd.f32 %v310, %v399
    %401 = vmatprep.mubr.f32.mxu0 0.0
    %402 = vmatmul.mubr.f32.gmra.mrb[0].mxu0 %v265
    %v403 = vpop.f32.mrb[0].mxu0
    %v404 = vadd.f32 %v306, %v403
    %v405 = vpop.f32.mrb[0].mxu0
    %v406 = vadd.f32 %v310, %v405
    %407 = vmatprep.mubr.f32.mxu0 0.0
    %408 = vmatmul.mubr.f32.gmra.mrb[0].mxu0 %v266
    %v409 = vpop.f32.mrb[0].mxu0
    %v410 = vadd.f32 %v306, %v409
    %v411 = vpop.f32.mrb[0].mxu0
    %v412 = vadd.f32 %v310, %v411
    %413 = vmatprep.mubr.f32.mxu0 0.0
    %414 = vmatmul.mubr.f32.gmra.mrb[0].mxu0 %v267
    %v415 = vpop.f32.mrb[0].mxu0
    %v416 = vadd.f32 %v306, %v415
    %v417 = vpop.f32.mrb[0].mxu0
    %v418 = vadd.f32 %v310, %v417
    %419 = vmatprep.mubr.f32.mxu0 0.0
    %420 = vmatmul.mubr.f32.gmra.mrb[0].mxu0 %v268
    %v421 = vpop.f32.mrb[0].mxu0
    %v422 = vadd.f32 %v306, %v421
    %v423 = vpop.f32.mrb[0].mxu0
    %v424 = vadd.f32 %v310, %v423
    %425 = vdwg.mxu0
    %v426 = vld [vmem:[#allocation7] sm:$0xff]
    %v427 = vld [vmem:[#allocation7 + $0x8] sm:$0xff]
    %v428 = vld [vmem:[#allocation7 + $0x10] sm:$0xff]
    %v429 = vld [vmem:[#allocation7 + $0x18] sm:$0xff]
    %v430 = vld [vmem:[#allocation7 + $0x20] sm:$0xff]
    %v431 = vld [vmem:[#allocation7 + $0x28] sm:$0xff]
    %v432 = vld [vmem:[#allocation7 + $0x30] sm:$0xff]
    %v433 = vld [vmem:[#allocation7 + $0x38] sm:$0xff]
    %v434 = vmul.f32 %v261, %v426
    %v435 = vmul.f32 %v262, %v427
    %v436 = vmul.f32 %v263, %v428
    %v437 = vmul.f32 %v264, %v429
    %v438 = vmul.f32 %v265, %v430
    %v439 = vmul.f32 %v266, %v431
    %v440 = vmul.f32 %v267, %v432
    %v441 = vmul.f32 %v268, %v433
    %v442 = vld [vmem:[%s5] sm:$0xff]
    %v443 = vld [vmem:[%s5 + $0x8] sm:$0xff]
    %v444 = vld [vmem:[%s5 + $0x10] sm:$0xff]
    %v445 = vld [vmem:[%s5 + $0x18] sm:$0xff]
    %v446 = vld [vmem:[%s5 + $0x20] sm:$0xff]
    %v447 = vld [vmem:[%s5 + $0x28] sm:$0xff]
    %v448 = vld [vmem:[%s5 + $0x30] sm:$0xff]
    %v449 = vld [vmem:[%s5 + $0x38] sm:$0xff]
    %v450 = vld [vmem:[%s5 + $0x40] sm:$0xff]
    %v451 = vld [vmem:[%s5 + $0x48] sm:$0xff]
    %v452 = vld [vmem:[%s5 + $0x50] sm:$0xff]
    %v453 = vld [vmem:[%s5 + $0x58] sm:$0xff]
    %v454 = vld [vmem:[%s5 + $0x60] sm:$0xff]
    %v455 = vld [vmem:[%s5 + $0x68] sm:$0xff]
    %v456 = vld [vmem:[%s5 + $0x70] sm:$0xff]
    %v457 = vld [vmem:[%s5 + $0x78] sm:$0xff]
    %v458 = vld [vmem:[%s5 + $0x80] sm:$0xff]
    %v459 = vld [vmem:[%s5 + $0x88] sm:$0xff]
    %v460 = vld [vmem:[%s5 + $0x90] sm:$0xff]
    %v461 = vld [vmem:[%s5 + $0x98] sm:$0xff]
    %v462 = vld [vmem:[%s5 + $0xa0] sm:$0xff]
    %v463 = vld [vmem:[%s5 + $0xa8] sm:$0xff]
    %v464 = vld [vmem:[%s5 + $0xb0] sm:$0xff]
    %v465 = vld [vmem:[%s5 + $0xb8] sm:$0xff]
    %v466 = vld [vmem:[%s5 + $0xc0] sm:$0xff]
    %v467 = vld [vmem:[%s5 + $0xc8] sm:$0xff]
    %v468 = vld [vmem:[%s5 + $0xd0] sm:$0xff]
    %v469 = vld [vmem:[%s5 + $0xd8] sm:$0xff]
    %v470 = vld [vmem:[%s5 + $0xe0] sm:$0xff]
    %v471 = vld [vmem:[%s5 + $0xe8] sm:$0xff]
    %v472 = vld [vmem:[%s5 + $0xf0] sm:$0xff]
    %v473 = vld [vmem:[%s5 + $0xf8] sm:$0xff]
    %v474 = vld [vmem:[#allocation6] sm:$0x3]
    %v476 = vlaneseq
    %v477 = vshrl.u32 %v476, 7
    %v478 = vsub.s32 0, %v477
    %v479 = vrot.slane %v474, %v478
    %v480 = vlaneseq
    %v481 = vshrl.u32 %v480, 7
    %v482 = vsub.s32 1, %v481
    %v483 = vrot.slane %v474, %v482
    %486 = vmatprep.subr.mxu0 %v443
    %487 = vmatpush1.msra.mxu0 %v442
    %488 = vmatprep.subr.mxu0 %v445
    %489 = vmatpush1.msra.mxu0 %v444
    %490 = vmatprep.subr.mxu0 %v447
    %491 = vmatpush1.msra.mxu0 %v446
    %492 = vmatprep.subr.mxu0 %v449
    %493 = vmatpush1.msra.mxu0 %v448
    %494 = vmatprep.subr.mxu0 %v451
    %495 = vmatpush1.msra.mxu0 %v450
    %496 = vmatprep.subr.mxu0 %v453
    %497 = vmatpush1.msra.mxu0 %v452
    %498 = vmatprep.subr.mxu0 %v455
    %499 = vmatpush1.msra.mxu0 %v454
    %500 = vmatprep.subr.mxu0 %v457
    %501 = vmatpush1.msra.mxu0 %v456
    %502 = vmatprep.subr.mxu0 %v459
    %503 = vmatpush1.msra.mxu0 %v458
    %504 = vmatprep.subr.mxu0 %v461
    %505 = vmatpush1.msra.mxu0 %v460
    %506 = vmatprep.subr.mxu0 %v463
    %507 = vmatpush1.msra.mxu0 %v462
    %508 = vmatprep.subr.mxu0 %v465
    %509 = vmatpush1.msra.mxu0 %v464
    %510 = vmatprep.subr.mxu0 %v467
    %511 = vmatpush1.msra.mxu0 %v466
    %512 = vmatprep.subr.mxu0 %v469
    %513 = vmatpush1.msra.mxu0 %v468
    %514 = vmatprep.subr.mxu0 %v471
    %515 = vmatpush1.msra.mxu0 %v470
    %516 = vmatprep.subr.mxu0 %v473
    %517 = vmatpush1.msra.mxu0 %v472
    %518 = vmatprep.subr.mxu0 0.0
    %519 = vmatpush1.msra.mxu0 0.0
    %520 = vmatprep.subr.mxu0 0.0
    %521 = vmatpush1.msra.mxu0 0.0
    %522 = vmatprep.subr.mxu0 0.0
    %523 = vmatpush1.msra.mxu0 0.0
    %524 = vmatprep.subr.mxu0 0.0
    %525 = vmatpush1.msra.mxu0 0.0
    %526 = vmatprep.subr.mxu0 0.0
    %527 = vmatpush1.msra.mxu0 0.0
    %528 = vmatprep.subr.mxu0 0.0
    %529 = vmatpush1.msra.mxu0 0.0
    %530 = vmatprep.subr.mxu0 0.0
    %531 = vmatpush1.msra.mxu0 0.0
    %532 = vmatprep.subr.mxu0 0.0
    %533 = vmatpush1.msra.mxu0 0.0
    %534 = vmatprep.subr.mxu0 0.0
    %535 = vmatpush1.msra.mxu0 0.0
    %536 = vmatprep.subr.mxu0 0.0
    %537 = vmatpush1.msra.mxu0 0.0
    %538 = vmatprep.subr.mxu0 0.0
    %539 = vmatpush1.msra.mxu0 0.0
    %540 = vmatprep.subr.mxu0 0.0
    %541 = vmatpush1.msra.mxu0 0.0
    %542 = vmatprep.subr.mxu0 0.0
    %543 = vmatpush1.msra.mxu0 0.0
    %544 = vmatprep.subr.mxu0 0.0
    %545 = vmatpush1.msra.mxu0 0.0
    %546 = vmatprep.subr.mxu0 0.0
    %547 = vmatpush1.msra.mxu0 0.0
    %548 = vmatprep.subr.mxu0 0.0
    %549 = vmatpush1.msra.mxu0 0.0
    %550 = vmatprep.mubr.f32.mxu0 0.0
    %551 = vmatmul.mubr.f32.gmra.mrb[0].mxu0 %v434
    %v552 = vpop.f32.mrb[0].mxu0
    %v553 = vadd.f32 %v479, %v552
    %v554 = vpop.f32.mrb[0].mxu0
    %v555 = vadd.f32 %v483, %v554
    %556 = vmatprep.mubr.f32.mxu0 0.0
    %557 = vmatmul.mubr.f32.gmra.mrb[0].mxu0 %v435
    %v558 = vpop.f32.mrb[0].mxu0
    %v559 = vadd.f32 %v479, %v558
    %v560 = vpop.f32.mrb[0].mxu0
    %v561 = vadd.f32 %v483, %v560
    %562 = vmatprep.mubr.f32.mxu0 0.0
    %563 = vmatmul.mubr.f32.gmra.mrb[0].mxu0 %v436
    %v564 = vpop.f32.mrb[0].mxu0
    %v565 = vadd.f32 %v479, %v564
    %v566 = vpop.f32.mrb[0].mxu0
    %v567 = vadd.f32 %v483, %v566
    %568 = vmatprep.mubr.f32.mxu0 0.0
    %569 = vmatmul.mubr.f32.gmra.mrb[0].mxu0 %v437
    %v570 = vpop.f32.mrb[0].mxu0
    %v571 = vadd.f32 %v479, %v570
    %v572 = vpop.f32.mrb[0].mxu0
    %v573 = vadd.f32 %v483, %v572
    %574 = vmatprep.mubr.f32.mxu0 0.0
    %575 = vmatmul.mubr.f32.gmra.mrb[0].mxu0 %v438
    %v576 = vpop.f32.mrb[0].mxu0
    %v577 = vadd.f32 %v479, %v576
    %v578 = vpop.f32.mrb[0].mxu0
    %v579 = vadd.f32 %v483, %v578
    %580 = vmatprep.mubr.f32.mxu0 0.0
    %581 = vmatmul.mubr.f32.gmra.mrb[0].mxu0 %v439
    %v582 = vpop.f32.mrb[0].mxu0
    %v583 = vadd.f32 %v479, %v582
    %v584 = vpop.f32.mrb[0].mxu0
    %v585 = vadd.f32 %v483, %v584
    %586 = vmatprep.mubr.f32.mxu0 0.0
    %587 = vmatmul.mubr.f32.gmra.mrb[0].mxu0 %v440
    %v588 = vpop.f32.mrb[0].mxu0
    %v589 = vadd.f32 %v479, %v588
    %v590 = vpop.f32.mrb[0].mxu0
    %v591 = vadd.f32 %v483, %v590
    %592 = vmatprep.mubr.f32.mxu0 0.0
    %593 = vmatmul.mubr.f32.gmra.mrb[0].mxu0 %v441
    %v594 = vpop.f32.mrb[0].mxu0
    %v595 = vadd.f32 %v479, %v594
    %v596 = vpop.f32.mrb[0].mxu0
    %v597 = vadd.f32 %v483, %v596
    %598 = vdwg.mxu0
    %v599 = vld [vmem:[%s8] sm:$0xff]
    %v600 = vld [vmem:[%s8 + $0x8] sm:$0xff]
    %v601 = vld [vmem:[%s8 + $0x10] sm:$0xff]
    %v602 = vld [vmem:[%s8 + $0x18] sm:$0xff]
    %v603 = vld [vmem:[%s8 + $0x20] sm:$0xff]
    %v604 = vld [vmem:[%s8 + $0x28] sm:$0xff]
    %v605 = vld [vmem:[%s8 + $0x30] sm:$0xff]
    %v606 = vld [vmem:[%s8 + $0x38] sm:$0xff]
    %v607 = vld [vmem:[%s8 + $0x40] sm:$0xff]
    %v608 = vld [vmem:[%s8 + $0x48] sm:$0xff]
    %v609 = vld [vmem:[%s8 + $0x50] sm:$0xff]
    %v610 = vld [vmem:[%s8 + $0x58] sm:$0xff]
    %v611 = vld [vmem:[%s8 + $0x60] sm:$0xff]
    %v612 = vld [vmem:[%s8 + $0x68] sm:$0xff]
    %v613 = vld [vmem:[%s8 + $0x70] sm:$0xff]
    %v614 = vld [vmem:[%s8 + $0x78] sm:$0xff]
    %v615 = vmul.f32 %v553, %v599
    %v616 = vmul.f32 %v555, %v600
    %v617 = vmul.f32 %v559, %v601
    %v618 = vmul.f32 %v561, %v602
    %v619 = vmul.f32 %v565, %v603
    %v620 = vmul.f32 %v567, %v604
    %v621 = vmul.f32 %v571, %v605
    %v622 = vmul.f32 %v573, %v606
    %v623 = vmul.f32 %v577, %v607
    %v624 = vmul.f32 %v579, %v608
    %v625 = vmul.f32 %v583, %v609
    %v626 = vmul.f32 %v585, %v610
    %v627 = vmul.f32 %v589, %v611
    %v628 = vmul.f32 %v591, %v612
    %v629 = vmul.f32 %v595, %v613
    %v630 = vmul.f32 %v597, %v614
    %v631 = vadd.f32 %v380, %v615
    %v632 = vadd.f32 %v382, %v616
    %v633 = vadd.f32 %v386, %v617
    %v634 = vadd.f32 %v388, %v618
    %v635 = vadd.f32 %v392, %v619
    %v636 = vadd.f32 %v394, %v620
    %v637 = vadd.f32 %v398, %v621
    %v638 = vadd.f32 %v400, %v622
    %v639 = vadd.f32 %v404, %v623
    %v640 = vadd.f32 %v406, %v624
    %v641 = vadd.f32 %v410, %v625
    %v642 = vadd.f32 %v412, %v626
    %v643 = vadd.f32 %v416, %v627
    %v644 = vadd.f32 %v418, %v628
    %v645 = vadd.f32 %v422, %v629
    %v646 = vadd.f32 %v424, %v630
    %vm647 = vcmp.gt.f32.partialorder %v631, 0.0
    %vm648 = vcmp.gt.f32.partialorder %v632, 0.0
    %vm649 = vcmp.gt.f32.partialorder %v633, 0.0
    %vm650 = vcmp.gt.f32.partialorder %v634, 0.0
    %vm651 = vcmp.gt.f32.partialorder %v635, 0.0
    %vm652 = vcmp.gt.f32.partialorder %v636, 0.0
    %vm653 = vcmp.gt.f32.partialorder %v637, 0.0
    %vm654 = vcmp.gt.f32.partialorder %v638, 0.0
    %vm655 = vcmp.gt.f32.partialorder %v639, 0.0
    %vm656 = vcmp.gt.f32.partialorder %v640, 0.0
    %vm657 = vcmp.gt.f32.partialorder %v641, 0.0
    %vm658 = vcmp.gt.f32.partialorder %v642, 0.0
    %vm659 = vcmp.gt.f32.partialorder %v643, 0.0
    %vm660 = vcmp.gt.f32.partialorder %v644, 0.0
    %vm661 = vcmp.gt.f32.partialorder %v645, 0.0
    %vm662 = vcmp.gt.f32.partialorder %v646, 0.0
    %v663 = vmul.f32 %v631, 0.01
    %v664 = vmul.f32 %v632, 0.01
    %v665 = vmul.f32 %v633, 0.01
    %v666 = vmul.f32 %v634, 0.01
    %v667 = vmul.f32 %v635, 0.01
    %v668 = vmul.f32 %v636, 0.01
    %v669 = vmul.f32 %v637, 0.01
    %v670 = vmul.f32 %v638, 0.01
    %v671 = vmul.f32 %v639, 0.01
    %v672 = vmul.f32 %v640, 0.01
    %v673 = vmul.f32 %v641, 0.01
    %v674 = vmul.f32 %v642, 0.01
    %v675 = vmul.f32 %v643, 0.01
    %v676 = vmul.f32 %v644, 0.01
    %v677 = vmul.f32 %v645, 0.01
    %v678 = vmul.f32 %v646, 0.01
    %v679 = vsel %vm647, %v631, %v663
    %v680 = vsel %vm648, %v632, %v664
    %v681 = vsel %vm649, %v633, %v665
    %v682 = vsel %vm650, %v634, %v666
    %v683 = vsel %vm651, %v635, %v667
    %v684 = vsel %vm652, %v636, %v668
    %v685 = vsel %vm653, %v637, %v669
    %v686 = vsel %vm654, %v638, %v670
    %v687 = vsel %vm655, %v639, %v671
    %v688 = vsel %vm656, %v640, %v672
    %v689 = vsel %vm657, %v641, %v673
    %v690 = vsel %vm658, %v642, %v674
    %v691 = vsel %vm659, %v643, %v675
    %v692 = vsel %vm660, %v644, %v676
    %v693 = vsel %vm661, %v645, %v677
    %v694 = vsel %vm662, %v646, %v678
    %v695 = vld [vmem:[%s9] sm:$0xff]
    %v696 = vld [vmem:[%s9 + $0x8] sm:$0xff]
    %v697 = vld [vmem:[%s9 + $0x10] sm:$0xff]
    %v698 = vld [vmem:[%s9 + $0x18] sm:$0xff]
    %v699 = vld [vmem:[%s9 + $0x20] sm:$0xff]
    %v700 = vld [vmem:[%s9 + $0x28] sm:$0xff]
    %v701 = vld [vmem:[%s9 + $0x30] sm:$0xff]
    %v702 = vld [vmem:[%s9 + $0x38] sm:$0xff]
    %v703 = vld [vmem:[%s9 + $0x40] sm:$0xff]
    %v704 = vld [vmem:[%s9 + $0x48] sm:$0xff]
    %v705 = vld [vmem:[%s9 + $0x50] sm:$0xff]
    %v706 = vld [vmem:[%s9 + $0x58] sm:$0xff]
    %v707 = vld [vmem:[%s9 + $0x60] sm:$0xff]
    %v708 = vld [vmem:[%s9 + $0x68] sm:$0xff]
    %v709 = vld [vmem:[%s9 + $0x70] sm:$0xff]
    %v710 = vld [vmem:[%s9 + $0x78] sm:$0xff]
    %v711 = vld [vmem:[%s9 + $0x80] sm:$0xff]
    %v712 = vld [vmem:[%s9 + $0x88] sm:$0xff]
    %v713 = vld [vmem:[%s9 + $0x90] sm:$0xff]
    %v714 = vld [vmem:[%s9 + $0x98] sm:$0xff]
    %v715 = vld [vmem:[%s9 + $0xa0] sm:$0xff]
    %v716 = vld [vmem:[%s9 + $0xa8] sm:$0xff]
    %v717 = vld [vmem:[%s9 + $0xb0] sm:$0xff]
    %v718 = vld [vmem:[%s9 + $0xb8] sm:$0xff]
    %v719 = vld [vmem:[%s9 + $0xc0] sm:$0xff]
    %v720 = vld [vmem:[%s9 + $0xc8] sm:$0xff]
    %v721 = vld [vmem:[%s9 + $0xd0] sm:$0xff]
    %v722 = vld [vmem:[%s9 + $0xd8] sm:$0xff]
    %v723 = vld [vmem:[%s9 + $0xe0] sm:$0xff]
    %v724 = vld [vmem:[%s9 + $0xe8] sm:$0xff]
    %v725 = vld [vmem:[%s9 + $0xf0] sm:$0xff]
    %v726 = vld [vmem:[%s9 + $0xf8] sm:$0xff]
    %v727 = vld [vmem:[%s10] sm:$0x1]
    %v729 = vlaneseq
    %v730 = vshrl.u32 %v729, 7
    %v731 = vsub.s32 0, %v730
    %v732 = vrot.slane %v727, %v731
    %734 = vmatprep.subr.mxu0 0.0
    %735 = vmatpush1.msra.mxu0 %v695
    %736 = vmatprep.subr.mxu0 0.0
    %737 = vmatpush1.msra.mxu0 %v696
    %738 = vmatprep.subr.mxu0 0.0
    %739 = vmatpush1.msra.mxu0 %v697
    %740 = vmatprep.subr.mxu0 0.0
    %741 = vmatpush1.msra.mxu0 %v698
    %742 = vmatprep.subr.mxu0 0.0
    %743 = vmatpush1.msra.mxu0 %v699
    %744 = vmatprep.subr.mxu0 0.0
    %745 = vmatpush1.msra.mxu0 %v700
    %746 = vmatprep.subr.mxu0 0.0
    %747 = vmatpush1.msra.mxu0 %v701
    %748 = vmatprep.subr.mxu0 0.0
    %749 = vmatpush1.msra.mxu0 %v702
    %750 = vmatprep.subr.mxu0 0.0
    %751 = vmatpush1.msra.mxu0 %v703
    %752 = vmatprep.subr.mxu0 0.0
    %753 = vmatpush1.msra.mxu0 %v704
    %754 = vmatprep.subr.mxu0 0.0
    %755 = vmatpush1.msra.mxu0 %v705
    %756 = vmatprep.subr.mxu0 0.0
    %757 = vmatpush1.msra.mxu0 %v706
    %758 = vmatprep.subr.mxu0 0.0
    %759 = vmatpush1.msra.mxu0 %v707
    %760 = vmatprep.subr.mxu0 0.0
    %761 = vmatpush1.msra.mxu0 %v708
    %762 = vmatprep.subr.mxu0 0.0
    %763 = vmatpush1.msra.mxu0 %v709
    %764 = vmatprep.subr.mxu0 0.0
    %765 = vmatpush1.msra.mxu0 %v710
    %766 = vmatprep.subr.mxu0 0.0
    %767 = vmatpush1.msra.mxu0 %v711
    %768 = vmatprep.subr.mxu0 0.0
    %769 = vmatpush1.msra.mxu0 %v712
    %770 = vmatprep.subr.mxu0 0.0
    %771 = vmatpush1.msra.mxu0 %v713
    %772 = vmatprep.subr.mxu0 0.0
    %773 = vmatpush1.msra.mxu0 %v714
    %774 = vmatprep.subr.mxu0 0.0
    %775 = vmatpush1.msra.mxu0 %v715
    %776 = vmatprep.subr.mxu0 0.0
    %777 = vmatpush1.msra.mxu0 %v716
    %778 = vmatprep.subr.mxu0 0.0
    %779 = vmatpush1.msra.mxu0 %v717
    %780 = vmatprep.subr.mxu0 0.0
    %781 = vmatpush1.msra.mxu0 %v718
    %782 = vmatprep.subr.mxu0 0.0
    %783 = vmatpush1.msra.mxu0 %v719
    %784 = vmatprep.subr.mxu0 0.0
    %785 = vmatpush1.msra.mxu0 %v720
    %786 = vmatprep.subr.mxu0 0.0
    %787 = vmatpush1.msra.mxu0 %v721
    %788 = vmatprep.subr.mxu0 0.0
    %789 = vmatpush1.msra.mxu0 %v722
    %790 = vmatprep.subr.mxu0 0.0
    %791 = vmatpush1.msra.mxu0 %v723
    %792 = vmatprep.subr.mxu0 0.0
    %793 = vmatpush1.msra.mxu0 %v724
    %794 = vmatprep.subr.mxu0 0.0
    %795 = vmatpush1.msra.mxu0 %v725
    %796 = vmatprep.subr.mxu0 0.0
    %797 = vmatpush1.msra.mxu0 %v726
    %798 = vmatprep.mubr.f32.mxu0 %v680
    %799 = vmatmul.mubr.f32.gmra.mrb[0].mxu0 %v679
    %v800 = vpop.f32.mrb[0].mxu0
    %v801 = vadd.f32 %v732, %v800
    %v802 = vpop.f32.mrb[0].mxu0
    %803 = vmatprep.mubr.f32.mxu0 %v682
    %804 = vmatmul.mubr.f32.gmra.mrb[0].mxu0 %v681
    %v805 = vpop.f32.mrb[0].mxu0
    %v806 = vadd.f32 %v732, %v805
    %v807 = vpop.f32.mrb[0].mxu0
    %808 = vmatprep.mubr.f32.mxu0 %v684
    %809 = vmatmul.mubr.f32.gmra.mrb[0].mxu0 %v683
    %v810 = vpop.f32.mrb[0].mxu0
    %v811 = vadd.f32 %v732, %v810
    %v812 = vpop.f32.mrb[0].mxu0
    %813 = vmatprep.mubr.f32.mxu0 %v686
    %814 = vmatmul.mubr.f32.gmra.mrb[0].mxu0 %v685
    %v815 = vpop.f32.mrb[0].mxu0
    %v816 = vadd.f32 %v732, %v815
    %v817 = vpop.f32.mrb[0].mxu0
    %818 = vmatprep.mubr.f32.mxu0 %v688
    %819 = vmatmul.mubr.f32.gmra.mrb[0].mxu0 %v687
    %v820 = vpop.f32.mrb[0].mxu0
    %v821 = vadd.f32 %v732, %v820
    %v822 = vpop.f32.mrb[0].mxu0
    %823 = vmatprep.mubr.f32.mxu0 %v690
    %824 = vmatmul.mubr.f32.gmra.mrb[0].mxu0 %v689
    %v825 = vpop.f32.mrb[0].mxu0
    %v826 = vadd.f32 %v732, %v825
    %v827 = vpop.f32.mrb[0].mxu0
    %828 = vmatprep.mubr.f32.mxu0 %v692
    %829 = vmatmul.mubr.f32.gmra.mrb[0].mxu0 %v691
    %v830 = vpop.f32.mrb[0].mxu0
    %v831 = vadd.f32 %v732, %v830
    %v832 = vpop.f32.mrb[0].mxu0
    %833 = vmatprep.mubr.f32.mxu0 %v694
    %834 = vmatmul.mubr.f32.gmra.mrb[0].mxu0 %v693
    %v835 = vpop.f32.mrb[0].mxu0
    %v836 = vadd.f32 %v732, %v835
    %v837 = vpop.f32.mrb[0].mxu0
    %838 = vdwg.mxu0
    %v839 = vld [vmem:[%s13] sm:$0xff]
    %v840 = vld [vmem:[%s13 + $0x8] sm:$0xff]
    %v841 = vld [vmem:[%s13 + $0x10] sm:$0xff]
    %v842 = vld [vmem:[%s13 + $0x18] sm:$0xff]
    %v843 = vld [vmem:[%s13 + $0x20] sm:$0xff]
    %v844 = vld [vmem:[%s13 + $0x28] sm:$0xff]
    %v845 = vld [vmem:[%s13 + $0x30] sm:$0xff]
    %v846 = vld [vmem:[%s13 + $0x38] sm:$0xff]
    %v847 = vld [vmem:[%s13 + $0x40] sm:$0xff]
    %v848 = vld [vmem:[%s13 + $0x48] sm:$0xff]
    %v849 = vld [vmem:[%s13 + $0x50] sm:$0xff]
    %v850 = vld [vmem:[%s13 + $0x58] sm:$0xff]
    %v851 = vld [vmem:[%s13 + $0x60] sm:$0xff]
    %v852 = vld [vmem:[%s13 + $0x68] sm:$0xff]
    %v853 = vld [vmem:[%s13 + $0x70] sm:$0xff]
    %v854 = vld [vmem:[%s13 + $0x78] sm:$0xff]
    %v855 = vmul.f32 %v679, %v839
    %v856 = vmul.f32 %v680, %v840
    %v857 = vmul.f32 %v681, %v841
    %v858 = vmul.f32 %v682, %v842
    %v859 = vmul.f32 %v683, %v843
    %v860 = vmul.f32 %v684, %v844
    %v861 = vmul.f32 %v685, %v845
    %v862 = vmul.f32 %v686, %v846
    %v863 = vmul.f32 %v687, %v847
    %v864 = vmul.f32 %v688, %v848
    %v865 = vmul.f32 %v689, %v849
    %v866 = vmul.f32 %v690, %v850
    %v867 = vmul.f32 %v691, %v851
    %v868 = vmul.f32 %v692, %v852
    %v869 = vmul.f32 %v693, %v853
    %v870 = vmul.f32 %v694, %v854
    %v871 = vld [vmem:[%s11] sm:$0xff]
    %v872 = vld [vmem:[%s11 + $0x8] sm:$0xff]
    %v873 = vld [vmem:[%s11 + $0x10] sm:$0xff]
    %v874 = vld [vmem:[%s11 + $0x18] sm:$0xff]
    %v875 = vld [vmem:[%s11 + $0x20] sm:$0xff]
    %v876 = vld [vmem:[%s11 + $0x28] sm:$0xff]
    %v877 = vld [vmem:[%s11 + $0x30] sm:$0xff]
    %v878 = vld [vmem:[%s11 + $0x38] sm:$0xff]
    %v879 = vld [vmem:[%s11 + $0x40] sm:$0xff]
    %v880 = vld [vmem:[%s11 + $0x48] sm:$0xff]
    %v881 = vld [vmem:[%s11 + $0x50] sm:$0xff]
    %v882 = vld [vmem:[%s11 + $0x58] sm:$0xff]
    %v883 = vld [vmem:[%s11 + $0x60] sm:$0xff]
    %v884 = vld [vmem:[%s11 + $0x68] sm:$0xff]
    %v885 = vld [vmem:[%s11 + $0x70] sm:$0xff]
    %v886 = vld [vmem:[%s11 + $0x78] sm:$0xff]
    %v887 = vld [vmem:[%s11 + $0x80] sm:$0xff]
    %v888 = vld [vmem:[%s11 + $0x88] sm:$0xff]
    %v889 = vld [vmem:[%s11 + $0x90] sm:$0xff]
    %v890 = vld [vmem:[%s11 + $0x98] sm:$0xff]
    %v891 = vld [vmem:[%s11 + $0xa0] sm:$0xff]
    %v892 = vld [vmem:[%s11 + $0xa8] sm:$0xff]
    %v893 = vld [vmem:[%s11 + $0xb0] sm:$0xff]
    %v894 = vld [vmem:[%s11 + $0xb8] sm:$0xff]
    %v895 = vld [vmem:[%s11 + $0xc0] sm:$0xff]
    %v896 = vld [vmem:[%s11 + $0xc8] sm:$0xff]
    %v897 = vld [vmem:[%s11 + $0xd0] sm:$0xff]
    %v898 = vld [vmem:[%s11 + $0xd8] sm:$0xff]
    %v899 = vld [vmem:[%s11 + $0xe0] sm:$0xff]
    %v900 = vld [vmem:[%s11 + $0xe8] sm:$0xff]
    %v901 = vld [vmem:[%s11 + $0xf0] sm:$0xff]
    %v902 = vld [vmem:[%s11 + $0xf8] sm:$0xff]
    %v903 = vld [vmem:[%s12] sm:$0x1]
    %v905 = vlaneseq
    %v906 = vshrl.u32 %v905, 7
    %v907 = vsub.s32 0, %v906
    %v908 = vrot.slane %v903, %v907
    %910 = vmatprep.subr.mxu0 0.0
    %911 = vmatpush1.msra.mxu0 %v871
    %912 = vmatprep.subr.mxu0 0.0
    %913 = vmatpush1.msra.mxu0 %v872
    %914 = vmatprep.subr.mxu0 0.0
    %915 = vmatpush1.msra.mxu0 %v873
    %916 = vmatprep.subr.mxu0 0.0
    %917 = vmatpush1.msra.mxu0 %v874
    %918 = vmatprep.subr.mxu0 0.0
    %919 = vmatpush1.msra.mxu0 %v875
    %920 = vmatprep.subr.mxu0 0.0
    %921 = vmatpush1.msra.mxu0 %v876
    %922 = vmatprep.subr.mxu0 0.0
    %923 = vmatpush1.msra.mxu0 %v877
    %924 = vmatprep.subr.mxu0 0.0
    %925 = vmatpush1.msra.mxu0 %v878
    %926 = vmatprep.subr.mxu0 0.0
    %927 = vmatpush1.msra.mxu0 %v879
    %928 = vmatprep.subr.mxu0 0.0
    %929 = vmatpush1.msra.mxu0 %v880
    %930 = vmatprep.subr.mxu0 0.0
    %931 = vmatpush1.msra.mxu0 %v881
    %932 = vmatprep.subr.mxu0 0.0
    %933 = vmatpush1.msra.mxu0 %v882
    %934 = vmatprep.subr.mxu0 0.0
    %935 = vmatpush1.msra.mxu0 %v883
    %936 = vmatprep.subr.mxu0 0.0
    %937 = vmatpush1.msra.mxu0 %v884
    %938 = vmatprep.subr.mxu0 0.0
    %939 = vmatpush1.msra.mxu0 %v885
    %940 = vmatprep.subr.mxu0 0.0
    %941 = vmatpush1.msra.mxu0 %v886
    %942 = vmatprep.subr.mxu0 0.0
    %943 = vmatpush1.msra.mxu0 %v887
    %944 = vmatprep.subr.mxu0 0.0
    %945 = vmatpush1.msra.mxu0 %v888
    %946 = vmatprep.subr.mxu0 0.0
    %947 = vmatpush1.msra.mxu0 %v889
    %948 = vmatprep.subr.mxu0 0.0
    %949 = vmatpush1.msra.mxu0 %v890
    %950 = vmatprep.subr.mxu0 0.0
    %951 = vmatpush1.msra.mxu0 %v891
    %952 = vmatprep.subr.mxu0 0.0
    %953 = vmatpush1.msra.mxu0 %v892
    %954 = vmatprep.subr.mxu0 0.0
    %955 = vmatpush1.msra.mxu0 %v893
    %956 = vmatprep.subr.mxu0 0.0
    %957 = vmatpush1.msra.mxu0 %v894
    %958 = vmatprep.subr.mxu0 0.0
    %959 = vmatpush1.msra.mxu0 %v895
    %960 = vmatprep.subr.mxu0 0.0
    %961 = vmatpush1.msra.mxu0 %v896
    %962 = vmatprep.subr.mxu0 0.0
    %963 = vmatpush1.msra.mxu0 %v897
    %964 = vmatprep.subr.mxu0 0.0
    %965 = vmatpush1.msra.mxu0 %v898
    %966 = vmatprep.subr.mxu0 0.0
    %967 = vmatpush1.msra.mxu0 %v899
    %968 = vmatprep.subr.mxu0 0.0
    %969 = vmatpush1.msra.mxu0 %v900
    %970 = vmatprep.subr.mxu0 0.0
    %971 = vmatpush1.msra.mxu0 %v901
    %972 = vmatprep.subr.mxu0 0.0
    %973 = vmatpush1.msra.mxu0 %v902
    %974 = vmatprep.mubr.f32.mxu0 %v856
    %975 = vmatmul.mubr.f32.gmra.mrb[0].mxu0 %v855
    %v976 = vpop.f32.mrb[0].mxu0
    %v977 = vadd.f32 %v908, %v976
    %v978 = vpop.f32.mrb[0].mxu0
    %979 = vmatprep.mubr.f32.mxu0 %v858
    %980 = vmatmul.mubr.f32.gmra.mrb[0].mxu0 %v857
    %v981 = vpop.f32.mrb[0].mxu0
    %v982 = vadd.f32 %v908, %v981
    %v983 = vpop.f32.mrb[0].mxu0
    %984 = vmatprep.mubr.f32.mxu0 %v860
    %985 = vmatmul.mubr.f32.gmra.mrb[0].mxu0 %v859
    %v986 = vpop.f32.mrb[0].mxu0
    %v987 = vadd.f32 %v908, %v986
    %v988 = vpop.f32.mrb[0].mxu0
    %989 = vmatprep.mubr.f32.mxu0 %v862
    %990 = vmatmul.mubr.f32.gmra.mrb[0].mxu0 %v861
    %v991 = vpop.f32.mrb[0].mxu0
    %v992 = vadd.f32 %v908, %v991
    %v993 = vpop.f32.mrb[0].mxu0
    %994 = vmatprep.mubr.f32.mxu0 %v864
    %995 = vmatmul.mubr.f32.gmra.mrb[0].mxu0 %v863
    %v996 = vpop.f32.mrb[0].mxu0
    %v997 = vadd.f32 %v908, %v996
    %v998 = vpop.f32.mrb[0].mxu0
    %999 = vmatprep.mubr.f32.mxu0 %v866
    %1000 = vmatmul.mubr.f32.gmra.mrb[0].mxu0 %v865
    %v1001 = vpop.f32.mrb[0].mxu0
    %v1002 = vadd.f32 %v908, %v1001
    %v1003 = vpop.f32.mrb[0].mxu0
    %1004 = vmatprep.mubr.f32.mxu0 %v868
    %1005 = vmatmul.mubr.f32.gmra.mrb[0].mxu0 %v867
    %v1006 = vpop.f32.mrb[0].mxu0
    %v1007 = vadd.f32 %v908, %v1006
    %v1008 = vpop.f32.mrb[0].mxu0
    %1009 = vmatprep.mubr.f32.mxu0 %v870
    %1010 = vmatmul.mubr.f32.gmra.mrb[0].mxu0 %v869
    %v1011 = vpop.f32.mrb[0].mxu0
    %v1012 = vadd.f32 %v908, %v1011
    %v1013 = vpop.f32.mrb[0].mxu0
    %1014 = vdwg.mxu0
    %v1015 = vld [vmem:[%s14] sm:$0xff]
    %v1016 = vld [vmem:[%s14 + $0x8] sm:$0xff]
    %v1017 = vld [vmem:[%s14 + $0x10] sm:$0xff]
    %v1018 = vld [vmem:[%s14 + $0x18] sm:$0xff]
    %v1019 = vld [vmem:[%s14 + $0x20] sm:$0xff]
    %v1020 = vld [vmem:[%s14 + $0x28] sm:$0xff]
    %v1021 = vld [vmem:[%s14 + $0x30] sm:$0xff]
    %v1022 = vld [vmem:[%s14 + $0x38] sm:$0xff]
    %v1023 = vmul.f32 %v977, %v1015
    %v1024 = vmul.f32 %v982, %v1016
    %v1025 = vmul.f32 %v987, %v1017
    %v1026 = vmul.f32 %v992, %v1018
    %v1027 = vmul.f32 %v997, %v1019
    %v1028 = vmul.f32 %v1002, %v1020
    %v1029 = vmul.f32 %v1007, %v1021
    %v1030 = vmul.f32 %v1012, %v1022
    %v1031 = vadd.f32 %v801, %v1023
    %v1032 = vadd.f32 %v806, %v1024
    %v1033 = vadd.f32 %v811, %v1025
    %v1034 = vadd.f32 %v816, %v1026
    %v1035 = vadd.f32 %v821, %v1027
    %v1036 = vadd.f32 %v826, %v1028
    %v1037 = vadd.f32 %v831, %v1029
    %v1038 = vadd.f32 %v836, %v1030
    %vm1039 = vcmask 261120
    %1040 = vst.msk [vmem:[%s15] sm:$0xff] %vm1039, %v1031
    %1041 = vst.msk [vmem:[%s15 + $0x8] sm:$0xff] %vm1039, %v1032
    %1042 = vst.msk [vmem:[%s15 + $0x10] sm:$0xff] %vm1039, %v1033
    %1043 = vst.msk [vmem:[%s15 + $0x18] sm:$0xff] %vm1039, %v1034
    %1044 = vst.msk [vmem:[%s15 + $0x20] sm:$0xff] %vm1039, %v1035
    %1045 = vst.msk [vmem:[%s15 + $0x28] sm:$0xff] %vm1039, %v1036
    %1046 = vst.msk [vmem:[%s15 + $0x30] sm:$0xff] %vm1039, %v1037
    %1047 = vst.msk [vmem:[%s15 + $0x38] sm:$0xff] %vm1039, %v1038
    // Predicated region
    $region78: #{tpu_custom_call.1} parent=1 // pred_check
      _
    $region79: #{tpu_custom_call.1} parent=1 // pred_check_branch
      %1049 = sbr.rel (0) target = $region81
    $region80: #{tpu_custom_call.1} parent=1 // pred_region
      _
    $region81: #{tpu_custom_call.1} parent=1 // pred_fallthru
      _
    // Predicated region
    $region82: #{tpu_custom_call.1} parent=1 // pred_check
      _
    $region83: #{tpu_custom_call.1} parent=1 // pred_check_branch
      %1051 = sbr.rel (0) target = $region85
    $region84: #{tpu_custom_call.1} parent=1 // pred_region
      _
    $region85: #{tpu_custom_call.1} parent=1 // pred_fallthru
      _
    %1052 = vsyncpa [#allocation3], 1
    %1053 = vsyncpa [#allocation5], 1
    %1054 = vsyncpa [#allocation8], 1

</llo_original>
